<compile_context>
chip_gen: v7x
topology: tpu7x:2x2x1
jax: 0.10.0
libtpu: 0.0.40
codegen_flags: <defaults>
</compile_context>

<pallas_src>
import math
from enum import Enum

import jax
import jax.numpy as jnp
from jax.experimental import pallas as pl
from jax.experimental.pallas import tpu as pltpu


class AttentionElement(str, Enum):
    NONE = "none"
    ATTENTION_KEYS = "attention_keys"
    ATTENTION_QUERIES = "attention_queries"
    ATTENTION_VALUES = "attention_values"


class ValuesMethod(str, Enum):
    RELATIVE_ANCHORS_ATTENTION = "relative_anchors_attention"
    SELF_ATTENTION = "self_attention"
    SIMILARITIES = "similarities"
    TRAINABLE = "trainable"
    ANCHORS = "anchors"


_LANE = 128
_SUBLANE = 8
_MIN_ROWS_FOR_PALLAS = 512  # below this, the fused XLA dot beats kernel launch cost


def _round_up(v: int, m: int) -> int:
    return ((v + m - 1) // m) * m


def _round_down(v: int, m: int) -> int:
    return max(m, (v // m) * m)


def _vmem_info():
    """Returns (physical VMEM bytes, working budget for tile sizing)."""
    try:
        info = pltpu.get_tpu_info()
        phys = int(getattr(info, "vmem_capacity_bytes", 64 * 1024 * 1024))
    except Exception:
        phys = 64 * 1024 * 1024  # v7x-safe default if the query is unavailable
    # ~40% of physical as the tiling budget: large tiles on v5e/v6e (128 MiB),
    # OOM-safe on v7x (64 MiB).
    budget = int(min(max(phys * 2 // 5, 16 * 1024 * 1024), 64 * 1024 * 1024))
    return phys, budget


# ----------------------------------------------------------------------------
# Pallas kernel: bias-free linear layer  out_tile = x_tile @ w_t_tile
# ----------------------------------------------------------------------------
def _linear_kernel(x_ref, wt_ref, o_ref):
    # x_ref: (TM, K), wt_ref: (K, TN), o_ref: (TM, TN); f32 accumulate on MXU.
    o_ref[...] = jnp.dot(
        x_ref[...], wt_ref[...], preferred_element_type=jnp.float32
    ).astype(o_ref.dtype)


def pallas_linear_pretransposed(x2d: jax.Array, w_t: jax.Array) -> jax.Array:
    """out = x2d @ w_t, with w_t already (in_features, n_pad), n_pad % 128 == 0.

    x2d: [M, K]   w_t: [K, N_pad]   returns [M, N_pad]
    """
    m, k = x2d.shape
    k2, n_pad = w_t.shape
    assert k == k2 and n_pad % _LANE == 0
    out_dtype = x2d.dtype

    in_b = jnp.dtype(x2d.dtype).itemsize
    w_b = jnp.dtype(w_t.dtype).itemsize
    out_b = jnp.dtype(out_dtype).itemsize

    phys_vmem, budget = _vmem_info()

    # --- N tiling: keep the weight resident (single buffer) if small enough,
    # otherwise stream it along N (double-buffered) so huge concatenated
    # weights degrade gracefully instead of failing to compile (esp. v7x).
    w_resident_budget = min(12 * 1024 * 1024, budget // 3)
    if k * n_pad * w_b <= w_resident_budget:
        tn, w_bufs = n_pad, 1
    else:
        tn = _round_down(w_resident_budget // (2 * k * w_b), _LANE)
        tn = min(tn, n_pad)
        w_bufs = 2
    gn = pl.cdiv(n_pad, tn)
    w_footprint = w_bufs * k * tn * w_b

    # --- M tiling: as large as the remaining budget allows, up to 4096 rows.
    per_row = 2 * (k * in_b + tn * out_b)  # double-buffered x + out tiles
    tm_cap = max(_SUBLANE, (budget - w_footprint) // max(per_row, 1))
    tm = min(4096, _round_up(m, _SUBLANE), _round_down(int(tm_cap), _SUBLANE))
    gm = pl.cdiv(m, tm)

    est_vmem = 2 * (tm * k * in_b + tm * tn * out_b) + w_footprint
    vmem_limit = int(min(phys_vmem * 3 // 4, max(8 * 1024 * 1024, 2 * est_vmem)))

    cost = pl.CostEstimate(
        flops=2 * m * k * n_pad,
        transcendentals=0,
        bytes_accessed=gn * m * k * in_b + k * n_pad * w_b + m * n_pad * out_b,
    )

    if gn == 1:
        # Weight block index never changes -> single buffer (pure VMEM saving).
        w_spec = pl.BlockSpec((k, tn), lambda i, j: (0, j),
                              pipeline_mode=pl.Buffered(1))
    else:
        w_spec = pl.BlockSpec((k, tn), lambda i, j: (0, j))

    return pl.pallas_call(
        _linear_kernel,
        out_shape=jax.ShapeDtypeStruct((m, n_pad), out_dtype),
        grid_spec=pltpu.PrefetchScalarGridSpec(
            num_scalar_prefetch=0,
            grid=(gm, gn),
            in_specs=[
                pl.BlockSpec((tm, k), lambda i, j: (i, 0)),
                w_spec,
            ],
            out_specs=pl.BlockSpec((tm, tn), lambda i, j: (i, j)),
        ),
        compiler_params=pltpu.CompilerParams(
            dimension_semantics=("parallel", "parallel"),
            vmem_limit_bytes=vmem_limit,
        ),
        cost_estimate=cost,
    )(x2d, w_t)


# ----------------------------------------------------------------------------
# QKVTransforms in JAX, using the Pallas kernel for the streaming-sized path
# ----------------------------------------------------------------------------
class QKVTransforms:
    def __init__(
        self,
        transform_elements,
        in_features: int,
        hidden_features: int,
        values_mode: ValuesMethod,
        *,
        key: jax.Array,
        min_rows_for_pallas: int = _MIN_ROWS_FOR_PALLAS,
    ):
        self.transform_elements = set(transform_elements)

        if (
            AttentionElement.ATTENTION_VALUES in self.transform_elements
            and values_mode != ValuesMethod.ANCHORS
        ):
            raise ValueError(
                f"Impossible to transform values if the values mode is {values_mode}"
            )

        self.in_features = in_features
        self.hidden_features = hidden_features
        self.min_rows_for_pallas = min_rows_for_pallas

        # Deterministic parameter init (Kaiming-uniform-like, as nn.Linear).
        # TODO(synk): not bit-identical to torch.nn.Linear's RNG; distribution
        # parity only.
        self.weights = {}
        bound = 1.0 / math.sqrt(in_features)
        for i, element in enumerate(sorted(self.transform_elements, key=str)):
            subkey = jax.random.fold_in(key, i)
            self.weights[element] = jax.random.uniform(
                subkey,
                (hidden_features, in_features),
                dtype=jnp.float32,
                minval=-bound,
                maxval=bound,
            )

        # Kernel-layout caches keyed by activation dtype: weights transposed
        # once, padded once; bf16 copies cached so bf16 activations hit the
        # native bf16 MXU path (no implicit f32 promotion inside the kernel).
        self._wt_cache = {}
        self._wt_pad_cache = {}
        self._fused_cache = {}

    # --- weight-layout helpers ------------------------------------------------
    def _wt(self, element, dtype):
        key_ = (element, jnp.dtype(dtype).name)
        if key_ not in self._wt_cache:
            self._wt_cache[key_] = self.weights[element].T.astype(dtype)
        return self._wt_cache[key_]

    def _wt_pad(self, element, dtype):
        key_ = (element, jnp.dtype(dtype).name)
        if key_ not in self._wt_pad_cache:
            w_t = self._wt(element, dtype)
            n_pad = _round_up(self.hidden_features, _LANE)
            if n_pad != self.hidden_features:
                w_t = jnp.pad(w_t, ((0, 0), (0, n_pad - self.hidden_features)))
            self._wt_pad_cache[key_] = w_t
        return self._wt_pad_cache[key_]

    def _fused_wt(self, elems, dtype):
        key_ = (tuple(elems), jnp.dtype(dtype).name)
        if key_ not in self._fused_cache:
            # Concat UN-padded transposed weights, pad the concat ONCE: no
            # per-element zero columns (halves weight DMA + output writeback
            # vs padding each element to 128).
            w_cat = jnp.concatenate([self._wt(e, dtype) for e in elems], axis=1)
            n_total = w_cat.shape[1]
            n_pad = _round_up(n_total, _LANE)
            if n_pad != n_total:
                w_cat = jnp.pad(w_cat, ((0, 0), (0, n_pad - n_total)))
            self._fused_cache[key_] = w_cat
        return self._fused_cache[key_]

    # --- forward(x, element): identical semantics to the PyTorch module ------
    def __call__(self, x: jax.Array, element: AttentionElement) -> jax.Array:
        if element not in self.weights:
            return x
        *lead, k = x.shape
        x2d = x.reshape((-1, k))
        m = x2d.shape[0]
        if m < self.min_rows_for_pallas:
            # Tiny problems: fixed pallas_call launch/pipeline cost dominates;
            # a single fused XLA dot is faster.
            out2d = jnp.dot(
                x2d, self._wt(element, x.dtype), preferred_element_type=jnp.float32
            ).astype(x.dtype)
        else:
            out2d = pallas_linear_pretransposed(x2d, self._wt_pad(element, x.dtype))
            # Strip N padding; under jit XLA fuses this slice into the consumer.
            out2d = out2d[:, : self.hidden_features]
        return out2d.reshape((*lead, self.hidden_features))

    # Fused projection: apply several element transforms with ONE matmul
    # (x read from HBM once, lane-dense concatenated output).
    def project(self, x: jax.Array, elements) -> dict:
        elems = [e for e in elements if e in self.weights]
        outs = {}
        if elems:
            *lead, k = x.shape
            x2d = x.reshape((-1, k))
            m = x2d.shape[0]
            h = self.hidden_features
            if m < self.min_rows_for_pallas:
                w_cat = jnp.concatenate([self._wt(e, x.dtype) for e in elems], axis=1)
                out2d = jnp.dot(
                    x2d, w_cat, preferred_element_type=jnp.float32
                ).astype(x.dtype)
            else:
                out2d = pallas_linear_pretransposed(x2d, self._fused_wt(elems, x.dtype))
            for idx, e in enumerate(elems):
                outs[e] = out2d[:, idx * h:(idx + 1) * h].reshape((*lead, h))
        for e in elements:
            if e not in outs:
                outs[e] = x  # identity for untransformed elements
        return outs


if __name__ == "__main__":
    key = jax.random.PRNGKey(0)
    k_x, k_params, k_big = jax.random.split(key, 3)

    batch, seq, in_features, hidden_features = 2, 8, 32, 64
    x = jax.random.normal(k_x, (batch, seq, in_features), dtype=jnp.float32)

    module = QKVTransforms(
        transform_elements=[
            AttentionElement.ATTENTION_QUERIES,
            AttentionElement.ATTENTION_KEYS,
        ],
        in_features=in_features,
        hidden_features=hidden_features,
        values_mode=ValuesMethod.TRAINABLE,
        key=k_params,
    )

    # --- small-shape path (original forward semantics; XLA fallback) ---------
    q_out = module(x, AttentionElement.ATTENTION_QUERIES)
    k_out = module(x, AttentionElement.ATTENTION_KEYS)
    v_out = module(x, AttentionElement.ATTENTION_VALUES)  # identity

    # --- streaming-sized input: exercises the Pallas kernel ------------------
    big_batch, big_seq = 4, 256  # M = 1024 rows >= min_rows_for_pallas
    x_big = jax.random.normal(
        k_big, (big_batch, big_seq, in_features), dtype=jnp.float32
    )
    q_big = module(x_big, AttentionElement.ATTENTION_QUERIES)
    fused_big = module.project(
        x_big,
        [
            AttentionElement.ATTENTION_QUERIES,
            AttentionElement.ATTENTION_KEYS,
            AttentionElement.ATTENTION_VALUES,
        ],
    )

    jax.block_until_ready((q_out, k_out, v_out, q_big, fused_big))

    # Correctness checks against plain-JAX references.
    w_q = module.weights[AttentionElement.ATTENTION_QUERIES]
    w_k = module.weights[AttentionElement.ATTENTION_KEYS]

    assert q_out.shape == (batch, seq, hidden_features)
    assert k_out.shape == (batch, seq, hidden_features)
    assert jnp.allclose(q_out, x @ w_q.T, atol=1e-5, rtol=1e-5)
    assert jnp.allclose(k_out, x @ w_k.T, atol=1e-5, rtol=1e-5)
    assert v_out is x  # identity for untransformed elements

    q_big_ref = x_big @ w_q.T
    k_big_ref = x_big @ w_k.T
    assert q_big.shape == (big_batch, big_seq, hidden_features)
    assert jnp.allclose(q_big, q_big_ref, atol=1e-4, rtol=1e-4)
    assert jnp.allclose(
        fused_big[AttentionElement.ATTENTION_QUERIES], q_big_ref, atol=1e-4, rtol=1e-4
    )
    assert jnp.allclose(
        fused_big[AttentionElement.ATTENTION_KEYS], k_big_ref, atol=1e-4, rtol=1e-4
    )
    assert fused_big[AttentionElement.ATTENTION_VALUES] is x_big

    print("KERNEL_OK")
</pallas_src>

<mosaic_0001>
module attributes {stable_mosaic.version = 11 : i64} {
  func.func @_linear_kernel(%arg0: i32, %arg1: i32, %arg2: memref<1024x32xf32, #tpu.memory_space<vmem>>, %arg3: memref<32x128xf32, #tpu.memory_space<vmem>>, %arg4: memref<1024x128xf32, #tpu.memory_space<vmem>>) attributes {dimension_semantics = [#tpu.dimension_semantics<parallel>, #tpu.dimension_semantics<parallel>], iteration_bounds = array<i64: 1, 1>, scalar_prefetch = 0 : i64, scratch_operands = 0 : i64, tpu.core_type = #tpu.core_type<tc>, window_params = [{transform_indices = @transform_0, window_bounds = array<i64: 1024, 32>}, {pipeline_mode = #tpu.pipeline_mode<synchronous>, transform_indices = @transform_1, window_bounds = array<i64: 32, 128>}, {transform_indices = @transform_2, window_bounds = array<i64: 1024, 128>}]} {
    %c0 = arith.constant 0 : index
    %c0_0 = arith.constant 0 : index
    %0 = vector.load %arg2[%c0, %c0_0] : memref<1024x32xf32, #tpu.memory_space<vmem>>, vector<1024x32xf32>
    %c0_1 = arith.constant 0 : index
    %c0_2 = arith.constant 0 : index
    %1 = vector.load %arg3[%c0_1, %c0_2] : memref<32x128xf32, #tpu.memory_space<vmem>>, vector<32x128xf32>
    %cst = arith.constant dense<0.000000e+00> : vector<1024x128xf32>
    %2 = tpu.matmul %0, %1, %cst {dimension_numbers = #tpu.dot_dimension_numbers<[1], [0], [0], [1], [0, 0, 1, 1], [], []>} : vector<1024x32xf32>, vector<32x128xf32>, vector<1024x128xf32> -> vector<1024x128xf32>
    %c0_3 = arith.constant 0 : index
    %c0_4 = arith.constant 0 : index
    %3 = vector.load %arg4[%c0_3, %c0_4] : memref<1024x128xf32, #tpu.memory_space<vmem>>, vector<1024x128xf32>
    tpu.vector_store %arg4[%c0_3, %c0_4], %2 {strides = array<i32>} : memref<1024x128xf32, #tpu.memory_space<vmem>>, vector<1024x128xf32>,
    return
  }
  func.func @transform_0(%arg0: i32, %arg1: i32) -> (i32, i32) {
    %c0_i32 = arith.constant 0 : i32
    %c0_i32_0 = arith.constant 0 : i32
    return %arg0, %c0_i32 : i32, i32
  }
  func.func @transform_1(%arg0: i32, %arg1: i32) -> (i32, i32) {
    %c0_i32 = arith.constant 0 : i32
    %c0_i32_0 = arith.constant 0 : i32
    return %c0_i32, %arg1 : i32, i32
  }
  func.func @transform_2(%arg0: i32, %arg1: i32) -> (i32, i32) {
    %c0_i32 = arith.constant 0 : i32
    return %arg0, %arg1 : i32, i32
  }
}

</mosaic_0001>

<llo_original>
// kernel: tpu_custom_call.1
$region0: #{tpu_custom_call.1}
  #allocation0 [shape = 'u32[]', space=smem, size = 0x4, offset = 0x4, fixed_abs, tag = 'smem constant byte address 0x4 - core index']
  #allocation1 [shape = 'u32[144,128]{1,0:T(1,128)}', space=vmem, size = 0x12000, scoped, tag = 'internal scratch']
  %s0 = inlined_call_operand.vmem [shape: f32[1024,32], index: 0, kind: input, shape index: {}]
  %s1 = inlined_call_operand.vmem [shape: f32[32,128], index: 1, kind: input, shape index: {}]
  %s2 = inlined_call_operand.hbm [shape: f32[1024,128], index: 2, kind: output, shape index: {}]
  %s3 = sld [smem:[#allocation0]]
  $region18: #{tpu_custom_call.1} parent=0
    _
  %s5 = ssub.s32 1, %s3
  %s6 = scalar_select 0, %s5, %s3
  $region1: #{tpu_custom_call.1} parent=0
    #allocation2 [shape = 'u8[524288]{0}', space=vmem, size = 0x80000, scoped, tag = 'output window, operand 0, single buffered']
    #allocation3 [shape = 's32[1]{0}', space=sflag, size = 0x4, scoped, tag = 'scoped memory for tpu_custom_call.1']
    %7 = vsyncpa [#allocation3], 0
    // Predicated region
    $region2: #{tpu_custom_call.1} parent=1 // pred_check
      _
    $region3: #{tpu_custom_call.1} parent=1 // pred_check_branch
      %9 = sbr.rel (0) target = $region5
    $region4: #{tpu_custom_call.1} parent=1 // pred_region
      _
    $region5: #{tpu_custom_call.1} parent=1 // pred_fallthru
      _
    // Predicated region
    $region6: #{tpu_custom_call.1} parent=1 // pred_check
      _
    $region7: #{tpu_custom_call.1} parent=1 // pred_check_branch
      %11 = sbr.rel (0) target = $region9
    $region8: #{tpu_custom_call.1} parent=1 // pred_region
      _
    $region9: #{tpu_custom_call.1} parent=1 // pred_fallthru
      _
    %v12 = vld [vmem:[%s0] sm:$0xff]
    %v13 = vld [vmem:[%s0 + $0x8] sm:$0xff]
    %v14 = vld [vmem:[%s0 + $0x10] sm:$0xff]
    %v15 = vld [vmem:[%s0 + $0x18] sm:$0xff]
    %v16 = vld [vmem:[%s0 + $0x20] sm:$0xff]
    %v17 = vld [vmem:[%s0 + $0x28] sm:$0xff]
    %v18 = vld [vmem:[%s0 + $0x30] sm:$0xff]
    %v19 = vld [vmem:[%s0 + $0x38] sm:$0xff]
    %v20 = vld [vmem:[%s0 + $0x40] sm:$0xff]
    %v21 = vld [vmem:[%s0 + $0x48] sm:$0xff]
    %v22 = vld [vmem:[%s0 + $0x50] sm:$0xff]
    %v23 = vld [vmem:[%s0 + $0x58] sm:$0xff]
    %v24 = vld [vmem:[%s0 + $0x60] sm:$0xff]
    %v25 = vld [vmem:[%s0 + $0x68] sm:$0xff]
    %v26 = vld [vmem:[%s0 + $0x70] sm:$0xff]
    %v27 = vld [vmem:[%s0 + $0x78] sm:$0xff]
    %v28 = vld [vmem:[%s0 + $0x80] sm:$0xff]
    %v29 = vld [vmem:[%s0 + $0x88] sm:$0xff]
    %v30 = vld [vmem:[%s0 + $0x90] sm:$0xff]
    %v31 = vld [vmem:[%s0 + $0x98] sm:$0xff]
    %v32 = vld [vmem:[%s0 + $0xa0] sm:$0xff]
    %v33 = vld [vmem:[%s0 + $0xa8] sm:$0xff]
    %v34 = vld [vmem:[%s0 + $0xb0] sm:$0xff]
    %v35 = vld [vmem:[%s0 + $0xb8] sm:$0xff]
    %v36 = vld [vmem:[%s0 + $0xc0] sm:$0xff]
    %v37 = vld [vmem:[%s0 + $0xc8] sm:$0xff]
    %v38 = vld [vmem:[%s0 + $0xd0] sm:$0xff]
    %v39 = vld [vmem:[%s0 + $0xd8] sm:$0xff]
    %v40 = vld [vmem:[%s0 + $0xe0] sm:$0xff]
    %v41 = vld [vmem:[%s0 + $0xe8] sm:$0xff]
    %v42 = vld [vmem:[%s0 + $0xf0] sm:$0xff]
    %v43 = vld [vmem:[%s0 + $0xf8] sm:$0xff]
    %v44 = vld [vmem:[%s0 + $0x100] sm:$0xff]
    %v45 = vld [vmem:[%s0 + $0x108] sm:$0xff]
    %v46 = vld [vmem:[%s0 + $0x110] sm:$0xff]
    %v47 = vld [vmem:[%s0 + $0x118] sm:$0xff]
    %v48 = vld [vmem:[%s0 + $0x120] sm:$0xff]
    %v49 = vld [vmem:[%s0 + $0x128] sm:$0xff]
    %v50 = vld [vmem:[%s0 + $0x130] sm:$0xff]
    %v51 = vld [vmem:[%s0 + $0x138] sm:$0xff]
    %v52 = vld [vmem:[%s0 + $0x140] sm:$0xff]
    %v53 = vld [vmem:[%s0 + $0x148] sm:$0xff]
    %v54 = vld [vmem:[%s0 + $0x150] sm:$0xff]
    %v55 = vld [vmem:[%s0 + $0x158] sm:$0xff]
    %v56 = vld [vmem:[%s0 + $0x160] sm:$0xff]
    %v57 = vld [vmem:[%s0 + $0x168] sm:$0xff]
    %v58 = vld [vmem:[%s0 + $0x170] sm:$0xff]
    %v59 = vld [vmem:[%s0 + $0x178] sm:$0xff]
    %v60 = vld [vmem:[%s0 + $0x180] sm:$0xff]
    %v61 = vld [vmem:[%s0 + $0x188] sm:$0xff]
    %v62 = vld [vmem:[%s0 + $0x190] sm:$0xff]
    %v63 = vld [vmem:[%s0 + $0x198] sm:$0xff]
    %v64 = vld [vmem:[%s0 + $0x1a0] sm:$0xff]
    %v65 = vld [vmem:[%s0 + $0x1a8] sm:$0xff]
    %v66 = vld [vmem:[%s0 + $0x1b0] sm:$0xff]
    %v67 = vld [vmem:[%s0 + $0x1b8] sm:$0xff]
    %v68 = vld [vmem:[%s0 + $0x1c0] sm:$0xff]
    %v69 = vld [vmem:[%s0 + $0x1c8] sm:$0xff]
    %v70 = vld [vmem:[%s0 + $0x1d0] sm:$0xff]
    %v71 = vld [vmem:[%s0 + $0x1d8] sm:$0xff]
    %v72 = vld [vmem:[%s0 + $0x1e0] sm:$0xff]
    %v73 = vld [vmem:[%s0 + $0x1e8] sm:$0xff]
    %v74 = vld [vmem:[%s0 + $0x1f0] sm:$0xff]
    %v75 = vld [vmem:[%s0 + $0x1f8] sm:$0xff]
    %v76 = vld [vmem:[%s0 + $0x200] sm:$0xff]
    %v77 = vld [vmem:[%s0 + $0x208] sm:$0xff]
    %v78 = vld [vmem:[%s0 + $0x210] sm:$0xff]
    %v79 = vld [vmem:[%s0 + $0x218] sm:$0xff]
    %v80 = vld [vmem:[%s0 + $0x220] sm:$0xff]
    %v81 = vld [vmem:[%s0 + $0x228] sm:$0xff]
    %v82 = vld [vmem:[%s0 + $0x230] sm:$0xff]
    %v83 = vld [vmem:[%s0 + $0x238] sm:$0xff]
    %v84 = vld [vmem:[%s0 + $0x240] sm:$0xff]
    %v85 = vld [vmem:[%s0 + $0x248] sm:$0xff]
    %v86 = vld [vmem:[%s0 + $0x250] sm:$0xff]
    %v87 = vld [vmem:[%s0 + $0x258] sm:$0xff]
    %v88 = vld [vmem:[%s0 + $0x260] sm:$0xff]
    %v89 = vld [vmem:[%s0 + $0x268] sm:$0xff]
    %v90 = vld [vmem:[%s0 + $0x270] sm:$0xff]
    %v91 = vld [vmem:[%s0 + $0x278] sm:$0xff]
    %v92 = vld [vmem:[%s0 + $0x280] sm:$0xff]
    %v93 = vld [vmem:[%s0 + $0x288] sm:$0xff]
    %v94 = vld [vmem:[%s0 + $0x290] sm:$0xff]
    %v95 = vld [vmem:[%s0 + $0x298] sm:$0xff]
    %v96 = vld [vmem:[%s0 + $0x2a0] sm:$0xff]
    %v97 = vld [vmem:[%s0 + $0x2a8] sm:$0xff]
    %v98 = vld [vmem:[%s0 + $0x2b0] sm:$0xff]
    %v99 = vld [vmem:[%s0 + $0x2b8] sm:$0xff]
    %v100 = vld [vmem:[%s0 + $0x2c0] sm:$0xff]
    %v101 = vld [vmem:[%s0 + $0x2c8] sm:$0xff]
    %v102 = vld [vmem:[%s0 + $0x2d0] sm:$0xff]
    %v103 = vld [vmem:[%s0 + $0x2d8] sm:$0xff]
    %v104 = vld [vmem:[%s0 + $0x2e0] sm:$0xff]
    %v105 = vld [vmem:[%s0 + $0x2e8] sm:$0xff]
    %v106 = vld [vmem:[%s0 + $0x2f0] sm:$0xff]
    %v107 = vld [vmem:[%s0 + $0x2f8] sm:$0xff]
    %v108 = vld [vmem:[%s0 + $0x300] sm:$0xff]
    %v109 = vld [vmem:[%s0 + $0x308] sm:$0xff]
    %v110 = vld [vmem:[%s0 + $0x310] sm:$0xff]
    %v111 = vld [vmem:[%s0 + $0x318] sm:$0xff]
    %v112 = vld [vmem:[%s0 + $0x320] sm:$0xff]
    %v113 = vld [vmem:[%s0 + $0x328] sm:$0xff]
    %v114 = vld [vmem:[%s0 + $0x330] sm:$0xff]
    %v115 = vld [vmem:[%s0 + $0x338] sm:$0xff]
    %v116 = vld [vmem:[%s0 + $0x340] sm:$0xff]
    %v117 = vld [vmem:[%s0 + $0x348] sm:$0xff]
    %v118 = vld [vmem:[%s0 + $0x350] sm:$0xff]
    %v119 = vld [vmem:[%s0 + $0x358] sm:$0xff]
    %v120 = vld [vmem:[%s0 + $0x360] sm:$0xff]
    %v121 = vld [vmem:[%s0 + $0x368] sm:$0xff]
    %v122 = vld [vmem:[%s0 + $0x370] sm:$0xff]
    %v123 = vld [vmem:[%s0 + $0x378] sm:$0xff]
    %v124 = vld [vmem:[%s0 + $0x380] sm:$0xff]
    %v125 = vld [vmem:[%s0 + $0x388] sm:$0xff]
    %v126 = vld [vmem:[%s0 + $0x390] sm:$0xff]
    %v127 = vld [vmem:[%s0 + $0x398] sm:$0xff]
    %v128 = vld [vmem:[%s0 + $0x3a0] sm:$0xff]
    %v129 = vld [vmem:[%s0 + $0x3a8] sm:$0xff]
    %v130 = vld [vmem:[%s0 + $0x3b0] sm:$0xff]
    %v131 = vld [vmem:[%s0 + $0x3b8] sm:$0xff]
    %v132 = vld [vmem:[%s0 + $0x3c0] sm:$0xff]
    %v133 = vld [vmem:[%s0 + $0x3c8] sm:$0xff]
    %v134 = vld [vmem:[%s0 + $0x3d0] sm:$0xff]
    %v135 = vld [vmem:[%s0 + $0x3d8] sm:$0xff]
    %v136 = vld [vmem:[%s0 + $0x3e0] sm:$0xff]
    %v137 = vld [vmem:[%s0 + $0x3e8] sm:$0xff]
    %v138 = vld [vmem:[%s0 + $0x3f0] sm:$0xff]
    %v139 = vld [vmem:[%s0 + $0x3f8] sm:$0xff]
    %v140 = vld [vmem:[%s1] sm:$0xff]
    %v141 = vld [vmem:[%s1 + $0x8] sm:$0xff]
    %v142 = vld [vmem:[%s1 + $0x10] sm:$0xff]
    %v143 = vld [vmem:[%s1 + $0x18] sm:$0xff]
    %vm144 = vcmask 261120
    %v146 = vsel %vm144, %v12, 0
    %v149 = vsel %vm144, %v13, 0
    %v152 = vsel %vm144, %v14, 0
    %v155 = vsel %vm144, %v15, 0
    %v158 = vsel %vm144, %v16, 0
    %v161 = vsel %vm144, %v17, 0
    %v164 = vsel %vm144, %v18, 0
    %v167 = vsel %vm144, %v19, 0
    %v170 = vsel %vm144, %v20, 0
    %v173 = vsel %vm144, %v21, 0
    %v176 = vsel %vm144, %v22, 0
    %v179 = vsel %vm144, %v23, 0
    %v182 = vsel %vm144, %v24, 0
    %v185 = vsel %vm144, %v25, 0
    %v188 = vsel %vm144, %v26, 0
    %v191 = vsel %vm144, %v27, 0
    %v194 = vsel %vm144, %v28, 0
    %v197 = vsel %vm144, %v29, 0
    %v200 = vsel %vm144, %v30, 0
    %v203 = vsel %vm144, %v31, 0
    %v206 = vsel %vm144, %v32, 0
    %v209 = vsel %vm144, %v33, 0
    %v212 = vsel %vm144, %v34, 0
    %v215 = vsel %vm144, %v35, 0
    %v218 = vsel %vm144, %v36, 0
    %v221 = vsel %vm144, %v37, 0
    %v224 = vsel %vm144, %v38, 0
    %v227 = vsel %vm144, %v39, 0
    %v230 = vsel %vm144, %v40, 0
    %v233 = vsel %vm144, %v41, 0
    %v236 = vsel %vm144, %v42, 0
    %v239 = vsel %vm144, %v43, 0
    %v242 = vsel %vm144, %v44, 0
    %v245 = vsel %vm144, %v45, 0
    %v248 = vsel %vm144, %v46, 0
    %v251 = vsel %vm144, %v47, 0
    %v254 = vsel %vm144, %v48, 0
    %v257 = vsel %vm144, %v49, 0
    %v260 = vsel %vm144, %v50, 0
    %v263 = vsel %vm144, %v51, 0
    %v266 = vsel %vm144, %v52, 0
    %v269 = vsel %vm144, %v53, 0
    %v272 = vsel %vm144, %v54, 0
    %v275 = vsel %vm144, %v55, 0
    %v278 = vsel %vm144, %v56, 0
    %v281 = vsel %vm144, %v57, 0
    %v284 = vsel %vm144, %v58, 0
    %v287 = vsel %vm144, %v59, 0
    %v290 = vsel %vm144, %v60, 0
    %v293 = vsel %vm144, %v61, 0
    %v296 = vsel %vm144, %v62, 0
    %v299 = vsel %vm144, %v63, 0
    %v302 = vsel %vm144, %v64, 0
    %v305 = vsel %vm144, %v65, 0
    %v308 = vsel %vm144, %v66, 0
    %v311 = vsel %vm144, %v67, 0
    %v314 = vsel %vm144, %v68, 0
    %v317 = vsel %vm144, %v69, 0
    %v320 = vsel %vm144, %v70, 0
    %v323 = vsel %vm144, %v71, 0
    %v326 = vsel %vm144, %v72, 0
    %v329 = vsel %vm144, %v73, 0
    %v332 = vsel %vm144, %v74, 0
    %v335 = vsel %vm144, %v75, 0
    %v338 = vsel %vm144, %v76, 0
    %v341 = vsel %vm144, %v77, 0
    %v344 = vsel %vm144, %v78, 0
    %v347 = vsel %vm144, %v79, 0
    %v350 = vsel %vm144, %v80, 0
    %v353 = vsel %vm144, %v81, 0
    %v356 = vsel %vm144, %v82, 0
    %v359 = vsel %vm144, %v83, 0
    %v362 = vsel %vm144, %v84, 0
    %v365 = vsel %vm144, %v85, 0
    %v368 = vsel %vm144, %v86, 0
    %v371 = vsel %vm144, %v87, 0
    %v374 = vsel %vm144, %v88, 0
    %v377 = vsel %vm144, %v89, 0
    %v380 = vsel %vm144, %v90, 0
    %v383 = vsel %vm144, %v91, 0
    %v386 = vsel %vm144, %v92, 0
    %v389 = vsel %vm144, %v93, 0
    %v392 = vsel %vm144, %v94, 0
    %v395 = vsel %vm144, %v95, 0
    %v398 = vsel %vm144, %v96, 0
    %v401 = vsel %vm144, %v97, 0
    %v404 = vsel %vm144, %v98, 0
    %v407 = vsel %vm144, %v99, 0
    %v410 = vsel %vm144, %v100, 0
    %v413 = vsel %vm144, %v101, 0
    %v416 = vsel %vm144, %v102, 0
    %v419 = vsel %vm144, %v103, 0
    %v422 = vsel %vm144, %v104, 0
    %v425 = vsel %vm144, %v105, 0
    %v428 = vsel %vm144, %v106, 0
    %v431 = vsel %vm144, %v107, 0
    %v434 = vsel %vm144, %v108, 0
    %v437 = vsel %vm144, %v109, 0
    %v440 = vsel %vm144, %v110, 0
    %v443 = vsel %vm144, %v111, 0
    %v446 = vsel %vm144, %v112, 0
    %v449 = vsel %vm144, %v113, 0
    %v452 = vsel %vm144, %v114, 0
    %v455 = vsel %vm144, %v115, 0
    %v458 = vsel %vm144, %v116, 0
    %v461 = vsel %vm144, %v117, 0
    %v464 = vsel %vm144, %v118, 0
    %v467 = vsel %vm144, %v119, 0
    %v470 = vsel %vm144, %v120, 0
    %v473 = vsel %vm144, %v121, 0
    %v476 = vsel %vm144, %v122, 0
    %v479 = vsel %vm144, %v123, 0
    %v482 = vsel %vm144, %v124, 0
    %v485 = vsel %vm144, %v125, 0
    %v488 = vsel %vm144, %v126, 0
    %v491 = vsel %vm144, %v127, 0
    %v494 = vsel %vm144, %v128, 0
    %v497 = vsel %vm144, %v129, 0
    %v500 = vsel %vm144, %v130, 0
    %v503 = vsel %vm144, %v131, 0
    %v506 = vsel %vm144, %v132, 0
    %v509 = vsel %vm144, %v133, 0
    %v512 = vsel %vm144, %v134, 0
    %v515 = vsel %vm144, %v135, 0
    %v518 = vsel %vm144, %v136, 0
    %v521 = vsel %vm144, %v137, 0
    %v524 = vsel %vm144, %v138, 0
    %v527 = vsel %vm144, %v139, 0
    %529 = vmatprep.subr.mxu0 0.0
    %530 = vmatpush1.msra.mxu0 %v140
    %531 = vmatprep.subr.mxu0 0.0
    %532 = vmatpush1.msra.mxu0 %v141
    %533 = vmatprep.subr.mxu0 0.0
    %534 = vmatpush1.msra.mxu0 %v142
    %535 = vmatprep.subr.mxu0 0.0
    %536 = vmatpush1.msra.mxu0 %v143
    %537 = vmatprep.subr.mxu0 0.0
    %538 = vmatpush1.msra.mxu0 0.0
    %539 = vmatprep.subr.mxu0 0.0
    %540 = vmatpush1.msra.mxu0 0.0
    %541 = vmatprep.subr.mxu0 0.0
    %542 = vmatpush1.msra.mxu0 0.0
    %543 = vmatprep.subr.mxu0 0.0
    %544 = vmatpush1.msra.mxu0 0.0
    %545 = vmatprep.subr.mxu0 0.0
    %546 = vmatpush1.msra.mxu0 0.0
    %547 = vmatprep.subr.mxu0 0.0
    %548 = vmatpush1.msra.mxu0 0.0
    %549 = vmatprep.subr.mxu0 0.0
    %550 = vmatpush1.msra.mxu0 0.0
    %551 = vmatprep.subr.mxu0 0.0
    %552 = vmatpush1.msra.mxu0 0.0
    %553 = vmatprep.subr.mxu0 0.0
    %554 = vmatpush1.msra.mxu0 0.0
    %555 = vmatprep.subr.mxu0 0.0
    %556 = vmatpush1.msra.mxu0 0.0
    %557 = vmatprep.subr.mxu0 0.0
    %558 = vmatpush1.msra.mxu0 0.0
    %559 = vmatprep.subr.mxu0 0.0
    %560 = vmatpush1.msra.mxu0 0.0
    %561 = vmatprep.subr.mxu0 0.0
    %562 = vmatpush1.msra.mxu0 0.0
    %563 = vmatprep.subr.mxu0 0.0
    %564 = vmatpush1.msra.mxu0 0.0
    %565 = vmatprep.subr.mxu0 0.0
    %566 = vmatpush1.msra.mxu0 0.0
    %567 = vmatprep.subr.mxu0 0.0
    %568 = vmatpush1.msra.mxu0 0.0
    %569 = vmatprep.subr.mxu0 0.0
    %570 = vmatpush1.msra.mxu0 0.0
    %571 = vmatprep.subr.mxu0 0.0
    %572 = vmatpush1.msra.mxu0 0.0
    %573 = vmatprep.subr.mxu0 0.0
    %574 = vmatpush1.msra.mxu0 0.0
    %575 = vmatprep.subr.mxu0 0.0
    %576 = vmatpush1.msra.mxu0 0.0
    %577 = vmatprep.subr.mxu0 0.0
    %578 = vmatpush1.msra.mxu0 0.0
    %579 = vmatprep.subr.mxu0 0.0
    %580 = vmatpush1.msra.mxu0 0.0
    %581 = vmatprep.subr.mxu0 0.0
    %582 = vmatpush1.msra.mxu0 0.0
    %583 = vmatprep.subr.mxu0 0.0
    %584 = vmatpush1.msra.mxu0 0.0
    %585 = vmatprep.subr.mxu0 0.0
    %586 = vmatpush1.msra.mxu0 0.0
    %587 = vmatprep.subr.mxu0 0.0
    %588 = vmatpush1.msra.mxu0 0.0
    %589 = vmatprep.subr.mxu0 0.0
    %590 = vmatpush1.msra.mxu0 0.0
    %591 = vmatprep.subr.mxu0 0.0
    %592 = vmatpush1.msra.mxu0 0.0
    %593 = vmatprep.mubr.f32.mxu0 0.0
    %594 = vmatmul.mubr.f32.gmra.mrb[0].mxu0 %v146
    %v595 = vpop.f32.mrb[0].mxu0
    %v596 = vadd.f32 0.0, %v595
    %v597 = vpop.f32.mrb[0].mxu0
    %598 = vmatprep.mubr.f32.mxu0 0.0
    %599 = vmatmul.mubr.f32.gmra.mrb[0].mxu0 %v149
    %v600 = vpop.f32.mrb[0].mxu0
    %v601 = vadd.f32 0.0, %v600
    %v602 = vpop.f32.mrb[0].mxu0
    %603 = vmatprep.mubr.f32.mxu0 0.0
    %604 = vmatmul.mubr.f32.gmra.mrb[0].mxu0 %v152
    %v605 = vpop.f32.mrb[0].mxu0
    %v606 = vadd.f32 0.0, %v605
    %v607 = vpop.f32.mrb[0].mxu0
    %608 = vmatprep.mubr.f32.mxu0 0.0
    %609 = vmatmul.mubr.f32.gmra.mrb[0].mxu0 %v155
    %v610 = vpop.f32.mrb[0].mxu0
    %v611 = vadd.f32 0.0, %v610
    %v612 = vpop.f32.mrb[0].mxu0
    %613 = vmatprep.mubr.f32.mxu0 0.0
    %614 = vmatmul.mubr.f32.gmra.mrb[0].mxu0 %v158
    %v615 = vpop.f32.mrb[0].mxu0
    %v616 = vadd.f32 0.0, %v615
    %v617 = vpop.f32.mrb[0].mxu0
    %618 = vmatprep.mubr.f32.mxu0 0.0
    %619 = vmatmul.mubr.f32.gmra.mrb[0].mxu0 %v161
    %v620 = vpop.f32.mrb[0].mxu0
    %v621 = vadd.f32 0.0, %v620
    %v622 = vpop.f32.mrb[0].mxu0
    %623 = vmatprep.mubr.f32.mxu0 0.0
    %624 = vmatmul.mubr.f32.gmra.mrb[0].mxu0 %v164
    %v625 = vpop.f32.mrb[0].mxu0
    %v626 = vadd.f32 0.0, %v625
    %v627 = vpop.f32.mrb[0].mxu0
    %628 = vmatprep.mubr.f32.mxu0 0.0
    %629 = vmatmul.mubr.f32.gmra.mrb[0].mxu0 %v167
    %v630 = vpop.f32.mrb[0].mxu0
    %v631 = vadd.f32 0.0, %v630
    %v632 = vpop.f32.mrb[0].mxu0
    %633 = vmatprep.mubr.f32.mxu0 0.0
    %634 = vmatmul.mubr.f32.gmra.mrb[0].mxu0 %v170
    %v635 = vpop.f32.mrb[0].mxu0
    %v636 = vadd.f32 0.0, %v635
    %v637 = vpop.f32.mrb[0].mxu0
    %638 = vmatprep.mubr.f32.mxu0 0.0
    %639 = vmatmul.mubr.f32.gmra.mrb[0].mxu0 %v173
    %v640 = vpop.f32.mrb[0].mxu0
    %v641 = vadd.f32 0.0, %v640
    %v642 = vpop.f32.mrb[0].mxu0
    %643 = vmatprep.mubr.f32.mxu0 0.0
    %644 = vmatmul.mubr.f32.gmra.mrb[0].mxu0 %v176
    %v645 = vpop.f32.mrb[0].mxu0
    %v646 = vadd.f32 0.0, %v645
    %v647 = vpop.f32.mrb[0].mxu0
    %648 = vmatprep.mubr.f32.mxu0 0.0
    %649 = vmatmul.mubr.f32.gmra.mrb[0].mxu0 %v179
    %v650 = vpop.f32.mrb[0].mxu0
    %v651 = vadd.f32 0.0, %v650
    %v652 = vpop.f32.mrb[0].mxu0
    %653 = vmatprep.mubr.f32.mxu0 0.0
    %654 = vmatmul.mubr.f32.gmra.mrb[0].mxu0 %v182
    %v655 = vpop.f32.mrb[0].mxu0
    %v656 = vadd.f32 0.0, %v655
    %v657 = vpop.f32.mrb[0].mxu0
    %658 = vmatprep.mubr.f32.mxu0 0.0
    %659 = vmatmul.mubr.f32.gmra.mrb[0].mxu0 %v185
    %v660 = vpop.f32.mrb[0].mxu0
    %v661 = vadd.f32 0.0, %v660
    %v662 = vpop.f32.mrb[0].mxu0
    %663 = vmatprep.mubr.f32.mxu0 0.0
    %664 = vmatmul.mubr.f32.gmra.mrb[0].mxu0 %v188
    %v665 = vpop.f32.mrb[0].mxu0
    %v666 = vadd.f32 0.0, %v665
    %v667 = vpop.f32.mrb[0].mxu0
    %668 = vmatprep.mubr.f32.mxu0 0.0
    %669 = vmatmul.mubr.f32.gmra.mrb[0].mxu0 %v191
    %v670 = vpop.f32.mrb[0].mxu0
    %v671 = vadd.f32 0.0, %v670
    %v672 = vpop.f32.mrb[0].mxu0
    %673 = vmatprep.mubr.f32.mxu0 0.0
    %674 = vmatmul.mubr.f32.gmra.mrb[0].mxu0 %v194
    %v675 = vpop.f32.mrb[0].mxu0
    %v676 = vadd.f32 0.0, %v675
    %v677 = vpop.f32.mrb[0].mxu0
    %678 = vmatprep.mubr.f32.mxu0 0.0
    %679 = vmatmul.mubr.f32.gmra.mrb[0].mxu0 %v197
    %v680 = vpop.f32.mrb[0].mxu0
    %v681 = vadd.f32 0.0, %v680
    %v682 = vpop.f32.mrb[0].mxu0
    %683 = vmatprep.mubr.f32.mxu0 0.0
    %684 = vmatmul.mubr.f32.gmra.mrb[0].mxu0 %v200
    %v685 = vpop.f32.mrb[0].mxu0
    %v686 = vadd.f32 0.0, %v685
    %v687 = vpop.f32.mrb[0].mxu0
    %688 = vmatprep.mubr.f32.mxu0 0.0
    %689 = vmatmul.mubr.f32.gmra.mrb[0].mxu0 %v203
    %v690 = vpop.f32.mrb[0].mxu0
    %v691 = vadd.f32 0.0, %v690
    %v692 = vpop.f32.mrb[0].mxu0
    %693 = vmatprep.mubr.f32.mxu0 0.0
    %694 = vmatmul.mubr.f32.gmra.mrb[0].mxu0 %v206
    %v695 = vpop.f32.mrb[0].mxu0
    %v696 = vadd.f32 0.0, %v695
    %v697 = vpop.f32.mrb[0].mxu0
    %698 = vmatprep.mubr.f32.mxu0 0.0
    %699 = vmatmul.mubr.f32.gmra.mrb[0].mxu0 %v209
    %v700 = vpop.f32.mrb[0].mxu0
    %v701 = vadd.f32 0.0, %v700
    %v702 = vpop.f32.mrb[0].mxu0
    %703 = vmatprep.mubr.f32.mxu0 0.0
    %704 = vmatmul.mubr.f32.gmra.mrb[0].mxu0 %v212
    %v705 = vpop.f32.mrb[0].mxu0
    %v706 = vadd.f32 0.0, %v705
    %v707 = vpop.f32.mrb[0].mxu0
    %708 = vmatprep.mubr.f32.mxu0 0.0
    %709 = vmatmul.mubr.f32.gmra.mrb[0].mxu0 %v215
    %v710 = vpop.f32.mrb[0].mxu0
    %v711 = vadd.f32 0.0, %v710
    %v712 = vpop.f32.mrb[0].mxu0
    %713 = vmatprep.mubr.f32.mxu0 0.0
    %714 = vmatmul.mubr.f32.gmra.mrb[0].mxu0 %v218
    %v715 = vpop.f32.mrb[0].mxu0
    %v716 = vadd.f32 0.0, %v715
    %v717 = vpop.f32.mrb[0].mxu0
    %718 = vmatprep.mubr.f32.mxu0 0.0
    %719 = vmatmul.mubr.f32.gmra.mrb[0].mxu0 %v221
    %v720 = vpop.f32.mrb[0].mxu0
    %v721 = vadd.f32 0.0, %v720
    %v722 = vpop.f32.mrb[0].mxu0
    %723 = vmatprep.mubr.f32.mxu0 0.0
    %724 = vmatmul.mubr.f32.gmra.mrb[0].mxu0 %v224
    %v725 = vpop.f32.mrb[0].mxu0
    %v726 = vadd.f32 0.0, %v725
    %v727 = vpop.f32.mrb[0].mxu0
    %728 = vmatprep.mubr.f32.mxu0 0.0
    %729 = vmatmul.mubr.f32.gmra.mrb[0].mxu0 %v227
    %v730 = vpop.f32.mrb[0].mxu0
    %v731 = vadd.f32 0.0, %v730
    %v732 = vpop.f32.mrb[0].mxu0
    %733 = vmatprep.mubr.f32.mxu0 0.0
    %734 = vmatmul.mubr.f32.gmra.mrb[0].mxu0 %v230
    %v735 = vpop.f32.mrb[0].mxu0
    %v736 = vadd.f32 0.0, %v735
    %v737 = vpop.f32.mrb[0].mxu0
    %738 = vmatprep.mubr.f32.mxu0 0.0
    %739 = vmatmul.mubr.f32.gmra.mrb[0].mxu0 %v233
    %v740 = vpop.f32.mrb[0].mxu0
    %v741 = vadd.f32 0.0, %v740
    %v742 = vpop.f32.mrb[0].mxu0
    %743 = vmatprep.mubr.f32.mxu0 0.0
    %744 = vmatmul.mubr.f32.gmra.mrb[0].mxu0 %v236
    %v745 = vpop.f32.mrb[0].mxu0
    %v746 = vadd.f32 0.0, %v745
    %v747 = vpop.f32.mrb[0].mxu0
    %748 = vmatprep.mubr.f32.mxu0 0.0
    %749 = vmatmul.mubr.f32.gmra.mrb[0].mxu0 %v239
    %v750 = vpop.f32.mrb[0].mxu0
    %v751 = vadd.f32 0.0, %v750
    %v752 = vpop.f32.mrb[0].mxu0
    %753 = vmatprep.mubr.f32.mxu0 0.0
    %754 = vmatmul.mubr.f32.gmra.mrb[0].mxu0 %v242
    %v755 = vpop.f32.mrb[0].mxu0
    %v756 = vadd.f32 0.0, %v755
    %v757 = vpop.f32.mrb[0].mxu0
    %758 = vmatprep.mubr.f32.mxu0 0.0
    %759 = vmatmul.mubr.f32.gmra.mrb[0].mxu0 %v245
    %v760 = vpop.f32.mrb[0].mxu0
    %v761 = vadd.f32 0.0, %v760
    %v762 = vpop.f32.mrb[0].mxu0
    %763 = vmatprep.mubr.f32.mxu0 0.0
    %764 = vmatmul.mubr.f32.gmra.mrb[0].mxu0 %v248
    %v765 = vpop.f32.mrb[0].mxu0
    %v766 = vadd.f32 0.0, %v765
    %v767 = vpop.f32.mrb[0].mxu0
    %768 = vmatprep.mubr.f32.mxu0 0.0
    %769 = vmatmul.mubr.f32.gmra.mrb[0].mxu0 %v251
    %v770 = vpop.f32.mrb[0].mxu0
    %v771 = vadd.f32 0.0, %v770
    %v772 = vpop.f32.mrb[0].mxu0
    %773 = vmatprep.mubr.f32.mxu0 0.0
    %774 = vmatmul.mubr.f32.gmra.mrb[0].mxu0 %v254
    %v775 = vpop.f32.mrb[0].mxu0
    %v776 = vadd.f32 0.0, %v775
    %v777 = vpop.f32.mrb[0].mxu0
    %778 = vmatprep.mubr.f32.mxu0 0.0
    %779 = vmatmul.mubr.f32.gmra.mrb[0].mxu0 %v257
    %v780 = vpop.f32.mrb[0].mxu0
    %v781 = vadd.f32 0.0, %v780
    %v782 = vpop.f32.mrb[0].mxu0
    %783 = vmatprep.mubr.f32.mxu0 0.0
    %784 = vmatmul.mubr.f32.gmra.mrb[0].mxu0 %v260
    %v785 = vpop.f32.mrb[0].mxu0
    %v786 = vadd.f32 0.0, %v785
    %v787 = vpop.f32.mrb[0].mxu0
    %788 = vmatprep.mubr.f32.mxu0 0.0
    %789 = vmatmul.mubr.f32.gmra.mrb[0].mxu0 %v263
    %v790 = vpop.f32.mrb[0].mxu0
    %v791 = vadd.f32 0.0, %v790
    %v792 = vpop.f32.mrb[0].mxu0
    %793 = vmatprep.mubr.f32.mxu0 0.0
    %794 = vmatmul.mubr.f32.gmra.mrb[0].mxu0 %v266
    %v795 = vpop.f32.mrb[0].mxu0
    %v796 = vadd.f32 0.0, %v795
    %v797 = vpop.f32.mrb[0].mxu0
    %798 = vmatprep.mubr.f32.mxu0 0.0
    %799 = vmatmul.mubr.f32.gmra.mrb[0].mxu0 %v269
    %v800 = vpop.f32.mrb[0].mxu0
    %v801 = vadd.f32 0.0, %v800
    %v802 = vpop.f32.mrb[0].mxu0
    %803 = vmatprep.mubr.f32.mxu0 0.0
    %804 = vmatmul.mubr.f32.gmra.mrb[0].mxu0 %v272
    %v805 = vpop.f32.mrb[0].mxu0
    %v806 = vadd.f32 0.0, %v805
    %v807 = vpop.f32.mrb[0].mxu0
    %808 = vmatprep.mubr.f32.mxu0 0.0
    %809 = vmatmul.mubr.f32.gmra.mrb[0].mxu0 %v275
    %v810 = vpop.f32.mrb[0].mxu0
    %v811 = vadd.f32 0.0, %v810
    %v812 = vpop.f32.mrb[0].mxu0
    %813 = vmatprep.mubr.f32.mxu0 0.0
    %814 = vmatmul.mubr.f32.gmra.mrb[0].mxu0 %v278
    %v815 = vpop.f32.mrb[0].mxu0
    %v816 = vadd.f32 0.0, %v815
    %v817 = vpop.f32.mrb[0].mxu0
    %818 = vmatprep.mubr.f32.mxu0 0.0
    %819 = vmatmul.mubr.f32.gmra.mrb[0].mxu0 %v281
    %v820 = vpop.f32.mrb[0].mxu0
    %v821 = vadd.f32 0.0, %v820
    %v822 = vpop.f32.mrb[0].mxu0
    %823 = vmatprep.mubr.f32.mxu0 0.0
    %824 = vmatmul.mubr.f32.gmra.mrb[0].mxu0 %v284
    %v825 = vpop.f32.mrb[0].mxu0
    %v826 = vadd.f32 0.0, %v825
    %v827 = vpop.f32.mrb[0].mxu0
    %828 = vmatprep.mubr.f32.mxu0 0.0
    %829 = vmatmul.mubr.f32.gmra.mrb[0].mxu0 %v287
    %v830 = vpop.f32.mrb[0].mxu0
    %v831 = vadd.f32 0.0, %v830
    %v832 = vpop.f32.mrb[0].mxu0
    %833 = vmatprep.mubr.f32.mxu0 0.0
    %834 = vmatmul.mubr.f32.gmra.mrb[0].mxu0 %v290
    %v835 = vpop.f32.mrb[0].mxu0
    %v836 = vadd.f32 0.0, %v835
    %v837 = vpop.f32.mrb[0].mxu0
    %838 = vmatprep.mubr.f32.mxu0 0.0
    %839 = vmatmul.mubr.f32.gmra.mrb[0].mxu0 %v293
    %v840 = vpop.f32.mrb[0].mxu0
    %v841 = vadd.f32 0.0, %v840
    %v842 = vpop.f32.mrb[0].mxu0
    %843 = vmatprep.mubr.f32.mxu0 0.0
    %844 = vmatmul.mubr.f32.gmra.mrb[0].mxu0 %v296
    %v845 = vpop.f32.mrb[0].mxu0
    %v846 = vadd.f32 0.0, %v845
    %v847 = vpop.f32.mrb[0].mxu0
    %848 = vmatprep.mubr.f32.mxu0 0.0
    %849 = vmatmul.mubr.f32.gmra.mrb[0].mxu0 %v299
    %v850 = vpop.f32.mrb[0].mxu0
    %v851 = vadd.f32 0.0, %v850
    %v852 = vpop.f32.mrb[0].mxu0
    %853 = vmatprep.mubr.f32.mxu0 0.0
    %854 = vmatmul.mubr.f32.gmra.mrb[0].mxu0 %v302
    %v855 = vpop.f32.mrb[0].mxu0
    %v856 = vadd.f32 0.0, %v855
    %v857 = vpop.f32.mrb[0].mxu0
    %858 = vmatprep.mubr.f32.mxu0 0.0
    %859 = vmatmul.mubr.f32.gmra.mrb[0].mxu0 %v305
    %v860 = vpop.f32.mrb[0].mxu0
    %v861 = vadd.f32 0.0, %v860
    %v862 = vpop.f32.mrb[0].mxu0
    %863 = vmatprep.mubr.f32.mxu0 0.0
    %864 = vmatmul.mubr.f32.gmra.mrb[0].mxu0 %v308
    %v865 = vpop.f32.mrb[0].mxu0
    %v866 = vadd.f32 0.0, %v865
    %v867 = vpop.f32.mrb[0].mxu0
    %868 = vmatprep.mubr.f32.mxu0 0.0
    %869 = vmatmul.mubr.f32.gmra.mrb[0].mxu0 %v311
    %v870 = vpop.f32.mrb[0].mxu0
    %v871 = vadd.f32 0.0, %v870
    %v872 = vpop.f32.mrb[0].mxu0
    %873 = vmatprep.mubr.f32.mxu0 0.0
    %874 = vmatmul.mubr.f32.gmra.mrb[0].mxu0 %v314
    %v875 = vpop.f32.mrb[0].mxu0
    %v876 = vadd.f32 0.0, %v875
    %v877 = vpop.f32.mrb[0].mxu0
    %878 = vmatprep.mubr.f32.mxu0 0.0
    %879 = vmatmul.mubr.f32.gmra.mrb[0].mxu0 %v317
    %v880 = vpop.f32.mrb[0].mxu0
    %v881 = vadd.f32 0.0, %v880
    %v882 = vpop.f32.mrb[0].mxu0
    %883 = vmatprep.mubr.f32.mxu0 0.0
    %884 = vmatmul.mubr.f32.gmra.mrb[0].mxu0 %v320
    %v885 = vpop.f32.mrb[0].mxu0
    %v886 = vadd.f32 0.0, %v885
    %v887 = vpop.f32.mrb[0].mxu0
    %888 = vmatprep.mubr.f32.mxu0 0.0
    %889 = vmatmul.mubr.f32.gmra.mrb[0].mxu0 %v323
    %v890 = vpop.f32.mrb[0].mxu0
    %v891 = vadd.f32 0.0, %v890
    %v892 = vpop.f32.mrb[0].mxu0
    %893 = vmatprep.mubr.f32.mxu0 0.0
    %894 = vmatmul.mubr.f32.gmra.mrb[0].mxu0 %v326
    %v895 = vpop.f32.mrb[0].mxu0
    %v896 = vadd.f32 0.0, %v895
    %v897 = vpop.f32.mrb[0].mxu0
    %898 = vmatprep.mubr.f32.mxu0 0.0
    %899 = vmatmul.mubr.f32.gmra.mrb[0].mxu0 %v329
    %v900 = vpop.f32.mrb[0].mxu0
    %v901 = vadd.f32 0.0, %v900
    %v902 = vpop.f32.mrb[0].mxu0
    %903 = vmatprep.mubr.f32.mxu0 0.0
    %904 = vmatmul.mubr.f32.gmra.mrb[0].mxu0 %v332
    %v905 = vpop.f32.mrb[0].mxu0
    %v906 = vadd.f32 0.0, %v905
    %v907 = vpop.f32.mrb[0].mxu0
    %908 = vmatprep.mubr.f32.mxu0 0.0
    %909 = vmatmul.mubr.f32.gmra.mrb[0].mxu0 %v335
    %v910 = vpop.f32.mrb[0].mxu0
    %v911 = vadd.f32 0.0, %v910
    %v912 = vpop.f32.mrb[0].mxu0
    %913 = vmatprep.mubr.f32.mxu0 0.0
    %914 = vmatmul.mubr.f32.gmra.mrb[0].mxu0 %v338
    %v915 = vpop.f32.mrb[0].mxu0
    %v916 = vadd.f32 0.0, %v915
    %v917 = vpop.f32.mrb[0].mxu0
    %918 = vmatprep.mubr.f32.mxu0 0.0
    %919 = vmatmul.mubr.f32.gmra.mrb[0].mxu0 %v341
    %v920 = vpop.f32.mrb[0].mxu0
    %v921 = vadd.f32 0.0, %v920
    %v922 = vpop.f32.mrb[0].mxu0
    %923 = vmatprep.mubr.f32.mxu0 0.0
    %924 = vmatmul.mubr.f32.gmra.mrb[0].mxu0 %v344
    %v925 = vpop.f32.mrb[0].mxu0
    %v926 = vadd.f32 0.0, %v925
    %v927 = vpop.f32.mrb[0].mxu0
    %928 = vmatprep.mubr.f32.mxu0 0.0
    %929 = vmatmul.mubr.f32.gmra.mrb[0].mxu0 %v347
    %v930 = vpop.f32.mrb[0].mxu0
    %v931 = vadd.f32 0.0, %v930
    %v932 = vpop.f32.mrb[0].mxu0
    %933 = vmatprep.mubr.f32.mxu0 0.0
    %934 = vmatmul.mubr.f32.gmra.mrb[0].mxu0 %v350
    %v935 = vpop.f32.mrb[0].mxu0
    %v936 = vadd.f32 0.0, %v935
    %v937 = vpop.f32.mrb[0].mxu0
    %938 = vmatprep.mubr.f32.mxu0 0.0
    %939 = vmatmul.mubr.f32.gmra.mrb[0].mxu0 %v353
    %v940 = vpop.f32.mrb[0].mxu0
    %v941 = vadd.f32 0.0, %v940
    %v942 = vpop.f32.mrb[0].mxu0
    %943 = vmatprep.mubr.f32.mxu0 0.0
    %944 = vmatmul.mubr.f32.gmra.mrb[0].mxu0 %v356
    %v945 = vpop.f32.mrb[0].mxu0
    %v946 = vadd.f32 0.0, %v945
    %v947 = vpop.f32.mrb[0].mxu0
    %948 = vmatprep.mubr.f32.mxu0 0.0
    %949 = vmatmul.mubr.f32.gmra.mrb[0].mxu0 %v359
    %v950 = vpop.f32.mrb[0].mxu0
    %v951 = vadd.f32 0.0, %v950
    %v952 = vpop.f32.mrb[0].mxu0
    %953 = vmatprep.mubr.f32.mxu0 0.0
    %954 = vmatmul.mubr.f32.gmra.mrb[0].mxu0 %v362
    %v955 = vpop.f32.mrb[0].mxu0
    %v956 = vadd.f32 0.0, %v955
    %v957 = vpop.f32.mrb[0].mxu0
    %958 = vmatprep.mubr.f32.mxu0 0.0
    %959 = vmatmul.mubr.f32.gmra.mrb[0].mxu0 %v365
    %v960 = vpop.f32.mrb[0].mxu0
    %v961 = vadd.f32 0.0, %v960
    %v962 = vpop.f32.mrb[0].mxu0
    %963 = vmatprep.mubr.f32.mxu0 0.0
    %964 = vmatmul.mubr.f32.gmra.mrb[0].mxu0 %v368
    %v965 = vpop.f32.mrb[0].mxu0
    %v966 = vadd.f32 0.0, %v965
    %v967 = vpop.f32.mrb[0].mxu0
    %968 = vmatprep.mubr.f32.mxu0 0.0
    %969 = vmatmul.mubr.f32.gmra.mrb[0].mxu0 %v371
    %v970 = vpop.f32.mrb[0].mxu0
    %v971 = vadd.f32 0.0, %v970
    %v972 = vpop.f32.mrb[0].mxu0
    %973 = vmatprep.mubr.f32.mxu0 0.0
    %974 = vmatmul.mubr.f32.gmra.mrb[0].mxu0 %v374
    %v975 = vpop.f32.mrb[0].mxu0
    %v976 = vadd.f32 0.0, %v975
    %v977 = vpop.f32.mrb[0].mxu0
    %978 = vmatprep.mubr.f32.mxu0 0.0
    %979 = vmatmul.mubr.f32.gmra.mrb[0].mxu0 %v377
    %v980 = vpop.f32.mrb[0].mxu0
    %v981 = vadd.f32 0.0, %v980
    %v982 = vpop.f32.mrb[0].mxu0
    %983 = vmatprep.mubr.f32.mxu0 0.0
    %984 = vmatmul.mubr.f32.gmra.mrb[0].mxu0 %v380
    %v985 = vpop.f32.mrb[0].mxu0
    %v986 = vadd.f32 0.0, %v985
    %v987 = vpop.f32.mrb[0].mxu0
    %988 = vmatprep.mubr.f32.mxu0 0.0
    %989 = vmatmul.mubr.f32.gmra.mrb[0].mxu0 %v383
    %v990 = vpop.f32.mrb[0].mxu0
    %v991 = vadd.f32 0.0, %v990
    %v992 = vpop.f32.mrb[0].mxu0
    %993 = vmatprep.mubr.f32.mxu0 0.0
    %994 = vmatmul.mubr.f32.gmra.mrb[0].mxu0 %v386
    %v995 = vpop.f32.mrb[0].mxu0
    %v996 = vadd.f32 0.0, %v995
    %v997 = vpop.f32.mrb[0].mxu0
    %998 = vmatprep.mubr.f32.mxu0 0.0
    %999 = vmatmul.mubr.f32.gmra.mrb[0].mxu0 %v389
    %v1000 = vpop.f32.mrb[0].mxu0
    %v1001 = vadd.f32 0.0, %v1000
    %v1002 = vpop.f32.mrb[0].mxu0
    %1003 = vmatprep.mubr.f32.mxu0 0.0
    %1004 = vmatmul.mubr.f32.gmra.mrb[0].mxu0 %v392
    %v1005 = vpop.f32.mrb[0].mxu0
    %v1006 = vadd.f32 0.0, %v1005
    %v1007 = vpop.f32.mrb[0].mxu0
    %1008 = vmatprep.mubr.f32.mxu0 0.0
    %1009 = vmatmul.mubr.f32.gmra.mrb[0].mxu0 %v395
    %v1010 = vpop.f32.mrb[0].mxu0
    %v1011 = vadd.f32 0.0, %v1010
    %v1012 = vpop.f32.mrb[0].mxu0
    %1013 = vmatprep.mubr.f32.mxu0 0.0
    %1014 = vmatmul.mubr.f32.gmra.mrb[0].mxu0 %v398
    %v1015 = vpop.f32.mrb[0].mxu0
    %v1016 = vadd.f32 0.0, %v1015
    %v1017 = vpop.f32.mrb[0].mxu0
    %1018 = vmatprep.mubr.f32.mxu0 0.0
    %1019 = vmatmul.mubr.f32.gmra.mrb[0].mxu0 %v401
    %v1020 = vpop.f32.mrb[0].mxu0
    %v1021 = vadd.f32 0.0, %v1020
    %v1022 = vpop.f32.mrb[0].mxu0
    %1023 = vmatprep.mubr.f32.mxu0 0.0
    %1024 = vmatmul.mubr.f32.gmra.mrb[0].mxu0 %v404
    %v1025 = vpop.f32.mrb[0].mxu0
    %v1026 = vadd.f32 0.0, %v1025
    %v1027 = vpop.f32.mrb[0].mxu0
    %1028 = vmatprep.mubr.f32.mxu0 0.0
    %1029 = vmatmul.mubr.f32.gmra.mrb[0].mxu0 %v407
    %v1030 = vpop.f32.mrb[0].mxu0
    %v1031 = vadd.f32 0.0, %v1030
    %v1032 = vpop.f32.mrb[0].mxu0
    %1033 = vmatprep.mubr.f32.mxu0 0.0
    %1034 = vmatmul.mubr.f32.gmra.mrb[0].mxu0 %v410
    %v1035 = vpop.f32.mrb[0].mxu0
    %v1036 = vadd.f32 0.0, %v1035
    %v1037 = vpop.f32.mrb[0].mxu0
    %1038 = vmatprep.mubr.f32.mxu0 0.0
    %1039 = vmatmul.mubr.f32.gmra.mrb[0].mxu0 %v413
    %v1040 = vpop.f32.mrb[0].mxu0
    %v1041 = vadd.f32 0.0, %v1040
    %v1042 = vpop.f32.mrb[0].mxu0
    %1043 = vmatprep.mubr.f32.mxu0 0.0
    %1044 = vmatmul.mubr.f32.gmra.mrb[0].mxu0 %v416
    %v1045 = vpop.f32.mrb[0].mxu0
    %v1046 = vadd.f32 0.0, %v1045
    %v1047 = vpop.f32.mrb[0].mxu0
    %1048 = vmatprep.mubr.f32.mxu0 0.0
    %1049 = vmatmul.mubr.f32.gmra.mrb[0].mxu0 %v419
    %v1050 = vpop.f32.mrb[0].mxu0
    %v1051 = vadd.f32 0.0, %v1050
    %v1052 = vpop.f32.mrb[0].mxu0
    %1053 = vmatprep.mubr.f32.mxu0 0.0
    %1054 = vmatmul.mubr.f32.gmra.mrb[0].mxu0 %v422
    %v1055 = vpop.f32.mrb[0].mxu0
    %v1056 = vadd.f32 0.0, %v1055
    %v1057 = vpop.f32.mrb[0].mxu0
    %1058 = vmatprep.mubr.f32.mxu0 0.0
    %1059 = vmatmul.mubr.f32.gmra.mrb[0].mxu0 %v425
    %v1060 = vpop.f32.mrb[0].mxu0
    %v1061 = vadd.f32 0.0, %v1060
    %v1062 = vpop.f32.mrb[0].mxu0
    %1063 = vmatprep.mubr.f32.mxu0 0.0
    %1064 = vmatmul.mubr.f32.gmra.mrb[0].mxu0 %v428
    %v1065 = vpop.f32.mrb[0].mxu0
    %v1066 = vadd.f32 0.0, %v1065
    %v1067 = vpop.f32.mrb[0].mxu0
    %1068 = vmatprep.mubr.f32.mxu0 0.0
    %1069 = vmatmul.mubr.f32.gmra.mrb[0].mxu0 %v431
    %v1070 = vpop.f32.mrb[0].mxu0
    %v1071 = vadd.f32 0.0, %v1070
    %v1072 = vpop.f32.mrb[0].mxu0
    %1073 = vmatprep.mubr.f32.mxu0 0.0
    %1074 = vmatmul.mubr.f32.gmra.mrb[0].mxu0 %v434
    %v1075 = vpop.f32.mrb[0].mxu0
    %v1076 = vadd.f32 0.0, %v1075
    %v1077 = vpop.f32.mrb[0].mxu0
    %1078 = vmatprep.mubr.f32.mxu0 0.0
    %1079 = vmatmul.mubr.f32.gmra.mrb[0].mxu0 %v437
    %v1080 = vpop.f32.mrb[0].mxu0
    %v1081 = vadd.f32 0.0, %v1080
    %v1082 = vpop.f32.mrb[0].mxu0
    %1083 = vmatprep.mubr.f32.mxu0 0.0
    %1084 = vmatmul.mubr.f32.gmra.mrb[0].mxu0 %v440
    %v1085 = vpop.f32.mrb[0].mxu0
    %v1086 = vadd.f32 0.0, %v1085
    %v1087 = vpop.f32.mrb[0].mxu0
    %1088 = vmatprep.mubr.f32.mxu0 0.0
    %1089 = vmatmul.mubr.f32.gmra.mrb[0].mxu0 %v443
    %v1090 = vpop.f32.mrb[0].mxu0
    %v1091 = vadd.f32 0.0, %v1090
    %v1092 = vpop.f32.mrb[0].mxu0
    %1093 = vmatprep.mubr.f32.mxu0 0.0
    %1094 = vmatmul.mubr.f32.gmra.mrb[0].mxu0 %v446
    %v1095 = vpop.f32.mrb[0].mxu0
    %v1096 = vadd.f32 0.0, %v1095
    %v1097 = vpop.f32.mrb[0].mxu0
    %1098 = vmatprep.mubr.f32.mxu0 0.0
    %1099 = vmatmul.mubr.f32.gmra.mrb[0].mxu0 %v449
    %v1100 = vpop.f32.mrb[0].mxu0
    %v1101 = vadd.f32 0.0, %v1100
    %v1102 = vpop.f32.mrb[0].mxu0
    %1103 = vmatprep.mubr.f32.mxu0 0.0
    %1104 = vmatmul.mubr.f32.gmra.mrb[0].mxu0 %v452
    %v1105 = vpop.f32.mrb[0].mxu0
    %v1106 = vadd.f32 0.0, %v1105
    %v1107 = vpop.f32.mrb[0].mxu0
    %1108 = vmatprep.mubr.f32.mxu0 0.0
    %1109 = vmatmul.mubr.f32.gmra.mrb[0].mxu0 %v455
    %v1110 = vpop.f32.mrb[0].mxu0
    %v1111 = vadd.f32 0.0, %v1110
    %v1112 = vpop.f32.mrb[0].mxu0
    %1113 = vmatprep.mubr.f32.mxu0 0.0
    %1114 = vmatmul.mubr.f32.gmra.mrb[0].mxu0 %v458
    %v1115 = vpop.f32.mrb[0].mxu0
    %v1116 = vadd.f32 0.0, %v1115
    %v1117 = vpop.f32.mrb[0].mxu0
    %1118 = vmatprep.mubr.f32.mxu0 0.0
    %1119 = vmatmul.mubr.f32.gmra.mrb[0].mxu0 %v461
    %v1120 = vpop.f32.mrb[0].mxu0
    %v1121 = vadd.f32 0.0, %v1120
    %v1122 = vpop.f32.mrb[0].mxu0
    %1123 = vmatprep.mubr.f32.mxu0 0.0
    %1124 = vmatmul.mubr.f32.gmra.mrb[0].mxu0 %v464
    %v1125 = vpop.f32.mrb[0].mxu0
    %v1126 = vadd.f32 0.0, %v1125
    %v1127 = vpop.f32.mrb[0].mxu0
    %1128 = vmatprep.mubr.f32.mxu0 0.0
    %1129 = vmatmul.mubr.f32.gmra.mrb[0].mxu0 %v467
    %v1130 = vpop.f32.mrb[0].mxu0
    %v1131 = vadd.f32 0.0, %v1130
    %v1132 = vpop.f32.mrb[0].mxu0
    %1133 = vmatprep.mubr.f32.mxu0 0.0
    %1134 = vmatmul.mubr.f32.gmra.mrb[0].mxu0 %v470
    %v1135 = vpop.f32.mrb[0].mxu0
    %v1136 = vadd.f32 0.0, %v1135
    %v1137 = vpop.f32.mrb[0].mxu0
    %1138 = vmatprep.mubr.f32.mxu0 0.0
    %1139 = vmatmul.mubr.f32.gmra.mrb[0].mxu0 %v473
    %v1140 = vpop.f32.mrb[0].mxu0
    %v1141 = vadd.f32 0.0, %v1140
    %v1142 = vpop.f32.mrb[0].mxu0
    %1143 = vmatprep.mubr.f32.mxu0 0.0
    %1144 = vmatmul.mubr.f32.gmra.mrb[0].mxu0 %v476
    %v1145 = vpop.f32.mrb[0].mxu0
    %v1146 = vadd.f32 0.0, %v1145
    %v1147 = vpop.f32.mrb[0].mxu0
    %1148 = vmatprep.mubr.f32.mxu0 0.0
    %1149 = vmatmul.mubr.f32.gmra.mrb[0].mxu0 %v479
    %v1150 = vpop.f32.mrb[0].mxu0
    %v1151 = vadd.f32 0.0, %v1150
    %v1152 = vpop.f32.mrb[0].mxu0
    %1153 = vmatprep.mubr.f32.mxu0 0.0
    %1154 = vmatmul.mubr.f32.gmra.mrb[0].mxu0 %v482
    %v1155 = vpop.f32.mrb[0].mxu0
    %v1156 = vadd.f32 0.0, %v1155
    %v1157 = vpop.f32.mrb[0].mxu0
    %1158 = vmatprep.mubr.f32.mxu0 0.0
    %1159 = vmatmul.mubr.f32.gmra.mrb[0].mxu0 %v485
    %v1160 = vpop.f32.mrb[0].mxu0
    %v1161 = vadd.f32 0.0, %v1160
    %v1162 = vpop.f32.mrb[0].mxu0
    %1163 = vmatprep.mubr.f32.mxu0 0.0
    %1164 = vmatmul.mubr.f32.gmra.mrb[0].mxu0 %v488
    %v1165 = vpop.f32.mrb[0].mxu0
    %v1166 = vadd.f32 0.0, %v1165
    %v1167 = vpop.f32.mrb[0].mxu0
    %1168 = vmatprep.mubr.f32.mxu0 0.0
    %1169 = vmatmul.mubr.f32.gmra.mrb[0].mxu0 %v491
    %v1170 = vpop.f32.mrb[0].mxu0
    %v1171 = vadd.f32 0.0, %v1170
    %v1172 = vpop.f32.mrb[0].mxu0
    %1173 = vmatprep.mubr.f32.mxu0 0.0
    %1174 = vmatmul.mubr.f32.gmra.mrb[0].mxu0 %v494
    %v1175 = vpop.f32.mrb[0].mxu0
    %v1176 = vadd.f32 0.0, %v1175
    %v1177 = vpop.f32.mrb[0].mxu0
    %1178 = vmatprep.mubr.f32.mxu0 0.0
    %1179 = vmatmul.mubr.f32.gmra.mrb[0].mxu0 %v497
    %v1180 = vpop.f32.mrb[0].mxu0
    %v1181 = vadd.f32 0.0, %v1180
    %v1182 = vpop.f32.mrb[0].mxu0
    %1183 = vmatprep.mubr.f32.mxu0 0.0
    %1184 = vmatmul.mubr.f32.gmra.mrb[0].mxu0 %v500
    %v1185 = vpop.f32.mrb[0].mxu0
    %v1186 = vadd.f32 0.0, %v1185
    %v1187 = vpop.f32.mrb[0].mxu0
    %1188 = vmatprep.mubr.f32.mxu0 0.0
    %1189 = vmatmul.mubr.f32.gmra.mrb[0].mxu0 %v503
    %v1190 = vpop.f32.mrb[0].mxu0
    %v1191 = vadd.f32 0.0, %v1190
    %v1192 = vpop.f32.mrb[0].mxu0
    %1193 = vmatprep.mubr.f32.mxu0 0.0
    %1194 = vmatmul.mubr.f32.gmra.mrb[0].mxu0 %v506
    %v1195 = vpop.f32.mrb[0].mxu0
    %v1196 = vadd.f32 0.0, %v1195
    %v1197 = vpop.f32.mrb[0].mxu0
    %1198 = vmatprep.mubr.f32.mxu0 0.0
    %1199 = vmatmul.mubr.f32.gmra.mrb[0].mxu0 %v509
    %v1200 = vpop.f32.mrb[0].mxu0
    %v1201 = vadd.f32 0.0, %v1200
    %v1202 = vpop.f32.mrb[0].mxu0
    %1203 = vmatprep.mubr.f32.mxu0 0.0
    %1204 = vmatmul.mubr.f32.gmra.mrb[0].mxu0 %v512
    %v1205 = vpop.f32.mrb[0].mxu0
    %v1206 = vadd.f32 0.0, %v1205
    %v1207 = vpop.f32.mrb[0].mxu0
    %1208 = vmatprep.mubr.f32.mxu0 0.0
    %1209 = vmatmul.mubr.f32.gmra.mrb[0].mxu0 %v515
    %v1210 = vpop.f32.mrb[0].mxu0
    %v1211 = vadd.f32 0.0, %v1210
    %v1212 = vpop.f32.mrb[0].mxu0
    %1213 = vmatprep.mubr.f32.mxu0 0.0
    %1214 = vmatmul.mubr.f32.gmra.mrb[0].mxu0 %v518
    %v1215 = vpop.f32.mrb[0].mxu0
    %v1216 = vadd.f32 0.0, %v1215
    %v1217 = vpop.f32.mrb[0].mxu0
    %1218 = vmatprep.mubr.f32.mxu0 0.0
    %1219 = vmatmul.mubr.f32.gmra.mrb[0].mxu0 %v521
    %v1220 = vpop.f32.mrb[0].mxu0
    %v1221 = vadd.f32 0.0, %v1220
    %v1222 = vpop.f32.mrb[0].mxu0
    %1223 = vmatprep.mubr.f32.mxu0 0.0
    %1224 = vmatmul.mubr.f32.gmra.mrb[0].mxu0 %v524
    %v1225 = vpop.f32.mrb[0].mxu0
    %v1226 = vadd.f32 0.0, %v1225
    %v1227 = vpop.f32.mrb[0].mxu0
    %1228 = vmatprep.mubr.f32.mxu0 0.0
    %1229 = vmatmul.mubr.f32.gmra.mrb[0].mxu0 %v527
    %v1230 = vpop.f32.mrb[0].mxu0
    %v1231 = vadd.f32 0.0, %v1230
    %v1232 = vpop.f32.mrb[0].mxu0
    %1233 = vdwg.mxu0
    %1234 = vst [vmem:[#allocation2] sm:$0xff] %v596
    %1235 = vst [vmem:[#allocation2 + $0x8] sm:$0xff] %v601
    %1236 = vst [vmem:[#allocation2 + $0x10] sm:$0xff] %v606
    %1237 = vst [vmem:[#allocation2 + $0x18] sm:$0xff] %v611
    %1238 = vst [vmem:[#allocation2 + $0x20] sm:$0xff] %v616
    %1239 = vst [vmem:[#allocation2 + $0x28] sm:$0xff] %v621
    %1240 = vst [vmem:[#allocation2 + $0x30] sm:$0xff] %v626
    %1241 = vst [vmem:[#allocation2 + $0x38] sm:$0xff] %v631
    %1242 = vst [vmem:[#allocation2 + $0x40] sm:$0xff] %v636
    %1243 = vst [vmem:[#allocation2 + $0x48] sm:$0xff] %v641
    %1244 = vst [vmem:[#allocation2 + $0x50] sm:$0xff] %v646
    %1245 = vst [vmem:[#allocation2 + $0x58] sm:$0xff] %v651
    %1246 = vst [vmem:[#allocation2 + $0x60] sm:$0xff] %v656
    %1247 = vst [vmem:[#allocation2 + $0x68] sm:$0xff] %v661
    %1248 = vst [vmem:[#allocation2 + $0x70] sm:$0xff] %v666
    %1249 = vst [vmem:[#allocation2 + $0x78] sm:$0xff] %v671
    %1250 = vst [vmem:[#allocation2 + $0x80] sm:$0xff] %v676
    %1251 = vst [vmem:[#allocation2 + $0x88] sm:$0xff] %v681
    %1252 = vst [vmem:[#allocation2 + $0x90] sm:$0xff] %v686
    %1253 = vst [vmem:[#allocation2 + $0x98] sm:$0xff] %v691
    %1254 = vst [vmem:[#allocation2 + $0xa0] sm:$0xff] %v696
    %1255 = vst [vmem:[#allocation2 + $0xa8] sm:$0xff] %v701
    %1256 = vst [vmem:[#allocation2 + $0xb0] sm:$0xff] %v706
    %1257 = vst [vmem:[#allocation2 + $0xb8] sm:$0xff] %v711
    %1258 = vst [vmem:[#allocation2 + $0xc0] sm:$0xff] %v716
    %1259 = vst [vmem:[#allocation2 + $0xc8] sm:$0xff] %v721
    %1260 = vst [vmem:[#allocation2 + $0xd0] sm:$0xff] %v726
    %1261 = vst [vmem:[#allocation2 + $0xd8] sm:$0xff] %v731
    %1262 = vst [vmem:[#allocation2 + $0xe0] sm:$0xff] %v736
    %1263 = vst [vmem:[#allocation2 + $0xe8] sm:$0xff] %v741
    %1264 = vst [vmem:[#allocation2 + $0xf0] sm:$0xff] %v746
    %1265 = vst [vmem:[#allocation2 + $0xf8] sm:$0xff] %v751
    %1266 = vst [vmem:[#allocation2 + $0x100] sm:$0xff] %v756
    %1267 = vst [vmem:[#allocation2 + $0x108] sm:$0xff] %v761
    %1268 = vst [vmem:[#allocation2 + $0x110] sm:$0xff] %v766
    %1269 = vst [vmem:[#allocation2 + $0x118] sm:$0xff] %v771
    %1270 = vst [vmem:[#allocation2 + $0x120] sm:$0xff] %v776
    %1271 = vst [vmem:[#allocation2 + $0x128] sm:$0xff] %v781
    %1272 = vst [vmem:[#allocation2 + $0x130] sm:$0xff] %v786
    %1273 = vst [vmem:[#allocation2 + $0x138] sm:$0xff] %v791
    %1274 = vst [vmem:[#allocation2 + $0x140] sm:$0xff] %v796
    %1275 = vst [vmem:[#allocation2 + $0x148] sm:$0xff] %v801
    %1276 = vst [vmem:[#allocation2 + $0x150] sm:$0xff] %v806
    %1277 = vst [vmem:[#allocation2 + $0x158] sm:$0xff] %v811
    %1278 = vst [vmem:[#allocation2 + $0x160] sm:$0xff] %v816
    %1279 = vst [vmem:[#allocation2 + $0x168] sm:$0xff] %v821
    %1280 = vst [vmem:[#allocation2 + $0x170] sm:$0xff] %v826
    %1281 = vst [vmem:[#allocation2 + $0x178] sm:$0xff] %v831
    %1282 = vst [vmem:[#allocation2 + $0x180] sm:$0xff] %v836
    %1283 = vst [vmem:[#allocation2 + $0x188] sm:$0xff] %v841
    %1284 = vst [vmem:[#allocation2 + $0x190] sm:$0xff] %v846
    %1285 = vst [vmem:[#allocation2 + $0x198] sm:$0xff] %v851
    %1286 = vst [vmem:[#allocation2 + $0x1a0] sm:$0xff] %v856
    %1287 = vst [vmem:[#allocation2 + $0x1a8] sm:$0xff] %v861
    %1288 = vst [vmem:[#allocation2 + $0x1b0] sm:$0xff] %v866
    %1289 = vst [vmem:[#allocation2 + $0x1b8] sm:$0xff] %v871
    %1290 = vst [vmem:[#allocation2 + $0x1c0] sm:$0xff] %v876
    %1291 = vst [vmem:[#allocation2 + $0x1c8] sm:$0xff] %v881
    %1292 = vst [vmem:[#allocation2 + $0x1d0] sm:$0xff] %v886
    %1293 = vst [vmem:[#allocation2 + $0x1d8] sm:$0xff] %v891
    %1294 = vst [vmem:[#allocation2 + $0x1e0] sm:$0xff] %v896
    %1295 = vst [vmem:[#allocation2 + $0x1e8] sm:$0xff] %v901
    %1296 = vst [vmem:[#allocation2 + $0x1f0] sm:$0xff] %v906
    %1297 = vst [vmem:[#allocation2 + $0x1f8] sm:$0xff] %v911
    %1298 = vst [vmem:[#allocation2 + $0x200] sm:$0xff] %v916
    %1299 = vst [vmem:[#allocation2 + $0x208] sm:$0xff] %v921
    %1300 = vst [vmem:[#allocation2 + $0x210] sm:$0xff] %v926
    %1301 = vst [vmem:[#allocation2 + $0x218] sm:$0xff] %v931
    %1302 = vst [vmem:[#allocation2 + $0x220] sm:$0xff] %v936
    %1303 = vst [vmem:[#allocation2 + $0x228] sm:$0xff] %v941
    %1304 = vst [vmem:[#allocation2 + $0x230] sm:$0xff] %v946
    %1305 = vst [vmem:[#allocation2 + $0x238] sm:$0xff] %v951
    %1306 = vst [vmem:[#allocation2 + $0x240] sm:$0xff] %v956
    %1307 = vst [vmem:[#allocation2 + $0x248] sm:$0xff] %v961
    %1308 = vst [vmem:[#allocation2 + $0x250] sm:$0xff] %v966
    %1309 = vst [vmem:[#allocation2 + $0x258] sm:$0xff] %v971
    %1310 = vst [vmem:[#allocation2 + $0x260] sm:$0xff] %v976
    %1311 = vst [vmem:[#allocation2 + $0x268] sm:$0xff] %v981
    %1312 = vst [vmem:[#allocation2 + $0x270] sm:$0xff] %v986
    %1313 = vst [vmem:[#allocation2 + $0x278] sm:$0xff] %v991
    %1314 = vst [vmem:[#allocation2 + $0x280] sm:$0xff] %v996
    %1315 = vst [vmem:[#allocation2 + $0x288] sm:$0xff] %v1001
    %1316 = vst [vmem:[#allocation2 + $0x290] sm:$0xff] %v1006
    %1317 = vst [vmem:[#allocation2 + $0x298] sm:$0xff] %v1011
    %1318 = vst [vmem:[#allocation2 + $0x2a0] sm:$0xff] %v1016
    %1319 = vst [vmem:[#allocation2 + $0x2a8] sm:$0xff] %v1021
    %1320 = vst [vmem:[#allocation2 + $0x2b0] sm:$0xff] %v1026
    %1321 = vst [vmem:[#allocation2 + $0x2b8] sm:$0xff] %v1031
    %1322 = vst [vmem:[#allocation2 + $0x2c0] sm:$0xff] %v1036
    %1323 = vst [vmem:[#allocation2 + $0x2c8] sm:$0xff] %v1041
    %1324 = vst [vmem:[#allocation2 + $0x2d0] sm:$0xff] %v1046
    %1325 = vst [vmem:[#allocation2 + $0x2d8] sm:$0xff] %v1051
    %1326 = vst [vmem:[#allocation2 + $0x2e0] sm:$0xff] %v1056
    %1327 = vst [vmem:[#allocation2 + $0x2e8] sm:$0xff] %v1061
    %1328 = vst [vmem:[#allocation2 + $0x2f0] sm:$0xff] %v1066
    %1329 = vst [vmem:[#allocation2 + $0x2f8] sm:$0xff] %v1071
    %1330 = vst [vmem:[#allocation2 + $0x300] sm:$0xff] %v1076
    %1331 = vst [vmem:[#allocation2 + $0x308] sm:$0xff] %v1081
    %1332 = vst [vmem:[#allocation2 + $0x310] sm:$0xff] %v1086
    %1333 = vst [vmem:[#allocation2 + $0x318] sm:$0xff] %v1091
    %1334 = vst [vmem:[#allocation2 + $0x320] sm:$0xff] %v1096
    %1335 = vst [vmem:[#allocation2 + $0x328] sm:$0xff] %v1101
    %1336 = vst [vmem:[#allocation2 + $0x330] sm:$0xff] %v1106
    %1337 = vst [vmem:[#allocation2 + $0x338] sm:$0xff] %v1111
    %1338 = vst [vmem:[#allocation2 + $0x340] sm:$0xff] %v1116
    %1339 = vst [vmem:[#allocation2 + $0x348] sm:$0xff] %v1121
    %1340 = vst [vmem:[#allocation2 + $0x350] sm:$0xff] %v1126
    %1341 = vst [vmem:[#allocation2 + $0x358] sm:$0xff] %v1131
    %1342 = vst [vmem:[#allocation2 + $0x360] sm:$0xff] %v1136
    %1343 = vst [vmem:[#allocation2 + $0x368] sm:$0xff] %v1141
    %1344 = vst [vmem:[#allocation2 + $0x370] sm:$0xff] %v1146
    %1345 = vst [vmem:[#allocation2 + $0x378] sm:$0xff] %v1151
    %1346 = vst [vmem:[#allocation2 + $0x380] sm:$0xff] %v1156
    %1347 = vst [vmem:[#allocation2 + $0x388] sm:$0xff] %v1161
    %1348 = vst [vmem:[#allocation2 + $0x390] sm:$0xff] %v1166
    %1349 = vst [vmem:[#allocation2 + $0x398] sm:$0xff] %v1171
    %1350 = vst [vmem:[#allocation2 + $0x3a0] sm:$0xff] %v1176
    %1351 = vst [vmem:[#allocation2 + $0x3a8] sm:$0xff] %v1181
    %1352 = vst [vmem:[#allocation2 + $0x3b0] sm:$0xff] %v1186
    %1353 = vst [vmem:[#allocation2 + $0x3b8] sm:$0xff] %v1191
    %1354 = vst [vmem:[#allocation2 + $0x3c0] sm:$0xff] %v1196
    %1355 = vst [vmem:[#allocation2 + $0x3c8] sm:$0xff] %v1201
    %1356 = vst [vmem:[#allocation2 + $0x3d0] sm:$0xff] %v1206
    %1357 = vst [vmem:[#allocation2 + $0x3d8] sm:$0xff] %v1211
    %1358 = vst [vmem:[#allocation2 + $0x3e0] sm:$0xff] %v1216
    %1359 = vst [vmem:[#allocation2 + $0x3e8] sm:$0xff] %v1221
    %1360 = vst [vmem:[#allocation2 + $0x3f0] sm:$0xff] %v1226
    %1361 = vst [vmem:[#allocation2 + $0x3f8] sm:$0xff] %v1231
    // Predicated region
    $region10: #{tpu_custom_call.1} parent=1 // pred_check
      _
    $region11: #{tpu_custom_call.1} parent=1 // pred_check_branch
      %1363 = sbr.rel (0) target = $region13
    $region12: #{tpu_custom_call.1} parent=1 // pred_region
      %s1365 = ssub.s32 16384, 16384
      %1366 = vsyncadd [#allocation3], %s1365
      %s1367 = sshll.u32 [#allocation2], 4
      %s1368 = int_to_ptr.vmem [resolvable:$true] %s1367
      %1373 = dma.vmem_to_hbm [thread:$0]  %s1368, 16384, %s2, [#allocation3], 128, 128, 8
    $region13: #{tpu_custom_call.1} parent=1 // pred_fallthru
      _
    // Predicated region
    $region14: #{tpu_custom_call.1} parent=1 // pred_check
      _
    $region15: #{tpu_custom_call.1} parent=1 // pred_check_branch
      %1375 = sbr.rel (0) target = $region17
    $region16: #{tpu_custom_call.1} parent=1 // pred_region
      %1376 = dma.done [#allocation3], 16384
    $region17: #{tpu_custom_call.1} parent=1 // pred_fallthru
      _
    %1377 = vsyncpa [#allocation3], 1

</llo_original>
